<compile_context>
chip_gen: v7x
topology: tpu7x:2x2x1
jax: 0.10.0
libtpu: 0.0.40
codegen_flags: <defaults>
</compile_context>

<pallas_src>
import functools

import jax
import jax.numpy as jnp
from jax.experimental import pallas as pl
from jax.experimental.pallas import tpu as pltpu

TILE_B = 128   # batch rows per grid step (matches v5e MXU; fine on v6e/v7x)
LANE = 128     # TPU lane width for dense output stores


def _mlp_kernel(x_ref, w1_ref, b1_ref, w2_ref, b2_ref, w3_ref, b3_ref, o_ref):
    """One (TILE_B, num_inputs) batch tile through the fused 3-layer MLP.

    x/W are bf16 (native MXU dtype); all dots accumulate in f32; bias add and
    ReLU run in f32 on the VPU. Weights/biases are the same VMEM-resident block
    for every grid step, so only the activation tile is streamed per iteration.
    """
    # Layer 1: Linear(num_inputs, 128) + ReLU
    h1 = jnp.dot(x_ref[...], w1_ref[...], preferred_element_type=jnp.float32)
    h1 = jnp.maximum(h1 + b1_ref[...], 0.0).astype(jnp.bfloat16)

    # Layer 2: Linear(128, 128) + ReLU
    h2 = jnp.dot(h1, w2_ref[...], preferred_element_type=jnp.float32)
    h2 = jnp.maximum(h2 + b2_ref[...], 0.0).astype(jnp.bfloat16)

    # Layer 3: Linear(128, num_outputs_padded_to_128)
    out = jnp.dot(h2, w3_ref[...], preferred_element_type=jnp.float32)
    o_ref[...] = (out + b3_ref[...]).astype(o_ref.dtype)


@jax.jit
def simple_net_forward(x, w1, b1, w2, b2, w3, b3):
    batch, num_inputs = x.shape
    hidden = w1.shape[1]
    num_outputs = w3.shape[1]

    # Pad batch up to a multiple of TILE_B (zeros; extra rows sliced off at the end).
    padded_batch = ((batch + TILE_B - 1) // TILE_B) * TILE_B
    if padded_batch != batch:
        x = jnp.pad(x, ((0, padded_batch - batch), (0, 0)))

    # Pad the final output dim to a full 128-lane tile: dense vst stores and a
    # full MXU N tile for the layer-3 matmul. Sliced back after the call.
    out_padded = ((num_outputs + LANE - 1) // LANE) * LANE
    if out_padded != num_outputs:
        w3 = jnp.pad(w3, ((0, 0), (0, out_padded - num_outputs)))
        b3 = jnp.pad(b3, ((0, 0), (0, out_padded - num_outputs)))

    # bf16 matmul operands (f32 accumulation inside the kernel); biases stay f32.
    xb = x.astype(jnp.bfloat16)
    w1b = w1.astype(jnp.bfloat16)
    w2b = w2.astype(jnp.bfloat16)
    w3b = w3.astype(jnp.bfloat16)
    b1f = b1.astype(jnp.float32)
    b2f = b2.astype(jnp.float32)
    b3f = b3.astype(jnp.float32)

    grid = (padded_batch // TILE_B,)

    out = pl.pallas_call(
        _mlp_kernel,
        out_shape=jax.ShapeDtypeStruct((padded_batch, out_padded), jnp.float32),
        grid=grid,
        in_specs=[
            pl.BlockSpec((TILE_B, num_inputs), lambda i: (i, 0)),   # x tile (streamed)
            pl.BlockSpec((num_inputs, hidden), lambda i: (0, 0)),   # W1 (resident)
            pl.BlockSpec((1, hidden), lambda i: (0, 0)),            # b1 (resident)
            pl.BlockSpec((hidden, hidden), lambda i: (0, 0)),       # W2 (resident)
            pl.BlockSpec((1, hidden), lambda i: (0, 0)),            # b2 (resident)
            pl.BlockSpec((hidden, out_padded), lambda i: (0, 0)),   # W3 (resident, padded)
            pl.BlockSpec((1, out_padded), lambda i: (0, 0)),        # b3 (resident, padded)
        ],
        out_specs=pl.BlockSpec((TILE_B, out_padded), lambda i: (i, 0)),
        compiler_params=pltpu.CompilerParams(
            dimension_semantics=("parallel",),
        ),
    )(xb, w1b, b1f, w2b, b2f, w3b, b3f)

    return out[:batch, :num_outputs]


def _reference_forward(x, w1, b1, w2, b2, w3, b3):
    """Plain-JAX reference using the same bf16-matmul / f32-accumulate recipe."""
    xb = x.astype(jnp.bfloat16)
    h1 = jnp.dot(xb, w1.astype(jnp.bfloat16), preferred_element_type=jnp.float32)
    h1 = jnp.maximum(h1 + b1, 0.0).astype(jnp.bfloat16)
    h2 = jnp.dot(h1, w2.astype(jnp.bfloat16), preferred_element_type=jnp.float32)
    h2 = jnp.maximum(h2 + b2, 0.0).astype(jnp.bfloat16)
    out = jnp.dot(h2, w3.astype(jnp.bfloat16), preferred_element_type=jnp.float32)
    return out + b3


def init_params(key, num_inputs, num_outputs, hidden=128):
    """Deterministic init mimicking PyTorch nn.Linear default:
    U(-1/sqrt(fan_in), 1/sqrt(fan_in)) for both weights and biases."""
    def linear(key, fan_in, fan_out):
        kw, kb = jax.random.split(key)
        bound = 1.0 / jnp.sqrt(fan_in)
        w = jax.random.uniform(kw, (fan_in, fan_out), jnp.float32, -bound, bound)
        b = jax.random.uniform(kb, (1, fan_out), jnp.float32, -bound, bound)
        return w, b

    k1, k2, k3 = jax.random.split(key, 3)
    w1, b1 = linear(k1, num_inputs, hidden)
    w2, b2 = linear(k2, hidden, hidden)
    w3, b3 = linear(k3, hidden, num_outputs)
    return w1, b1, w2, b2, w3, b3


if __name__ == "__main__":
    # Shapes consistent with Simple_Net: state_space_input=32, action_num=4.
    num_inputs, num_outputs = 32, 4

    key = jax.random.PRNGKey(0)
    k_x1, k_x2, k_p = jax.random.split(key, 3)
    params = init_params(k_p, num_inputs, num_outputs)

    # Case 1: small batch (padded to one TILE_B grid step inside the wrapper).
    x_small = jax.random.normal(k_x1, (8, num_inputs), jnp.float32)
    out_small = jax.block_until_ready(simple_net_forward(x_small, *params))
    ref_small = _reference_forward(x_small, *params)
    assert out_small.shape == (8, num_outputs)
    assert jnp.allclose(out_small, ref_small, atol=1e-3, rtol=1e-3), "mismatch (batch=8)"

    # Case 2: larger, non-multiple-of-TILE_B batch exercising multiple grid steps.
    x_big = jax.random.normal(k_x2, (300, num_inputs), jnp.float32)
    out_big = jax.block_until_ready(simple_net_forward(x_big, *params))
    ref_big = _reference_forward(x_big, *params)
    assert out_big.shape == (300, num_outputs)
    assert jnp.allclose(out_big, ref_big, atol=1e-3, rtol=1e-3), "mismatch (batch=300)"

    print("KERNEL_OK")
</pallas_src>

<mosaic_0001>
module attributes {stable_mosaic.version = 11 : i64} {
  func.func @_mlp_kernel(%arg0: i32, %arg1: memref<128x32xbf16, #tpu.memory_space<vmem>>, %arg2: memref<32x128xbf16, #tpu.memory_space<vmem>>, %arg3: memref<1x128xf32, #tpu.memory_space<vmem>>, %arg4: memref<128x128xbf16, #tpu.memory_space<vmem>>, %arg5: memref<1x128xf32, #tpu.memory_space<vmem>>, %arg6: memref<128x128xbf16, #tpu.memory_space<vmem>>, %arg7: memref<1x128xf32, #tpu.memory_space<vmem>>, %arg8: memref<128x128xf32, #tpu.memory_space<vmem>>) attributes {dimension_semantics = [#tpu.dimension_semantics<parallel>], iteration_bounds = array<i64: 1>, scalar_prefetch = 0 : i64, scratch_operands = 0 : i64, tpu.core_type = #tpu.core_type<tc>, window_params = [{transform_indices = @transform_0, window_bounds = array<i64: 128, 32>}, {pipeline_mode = #tpu.pipeline_mode<synchronous>, transform_indices = @transform_1, window_bounds = array<i64: 32, 128>}, {pipeline_mode = #tpu.pipeline_mode<synchronous>, transform_indices = @transform_2, window_bounds = array<i64: 1, 128>}, {pipeline_mode = #tpu.pipeline_mode<synchronous>, transform_indices = @transform_3, window_bounds = array<i64: 128, 128>}, {pipeline_mode = #tpu.pipeline_mode<synchronous>, transform_indices = @transform_4, window_bounds = array<i64: 1, 128>}, {pipeline_mode = #tpu.pipeline_mode<synchronous>, transform_indices = @transform_5, window_bounds = array<i64: 128, 128>}, {pipeline_mode = #tpu.pipeline_mode<synchronous>, transform_indices = @transform_6, window_bounds = array<i64: 1, 128>}, {transform_indices = @transform_7, window_bounds = array<i64: 128, 128>}]} {
    %c0 = arith.constant 0 : index
    %c0_0 = arith.constant 0 : index
    %0 = vector.load %arg1[%c0, %c0_0] : memref<128x32xbf16, #tpu.memory_space<vmem>>, vector<128x32xbf16>
    %c0_1 = arith.constant 0 : index
    %c0_2 = arith.constant 0 : index
    %1 = vector.load %arg2[%c0_1, %c0_2] : memref<32x128xbf16, #tpu.memory_space<vmem>>, vector<32x128xbf16>
    %cst = arith.constant dense<0.000000e+00> : vector<128x128xf32>
    %2 = tpu.matmul %0, %1, %cst {dimension_numbers = #tpu.dot_dimension_numbers<[1], [0], [0], [1], [0, 0, 1, 1], [], []>} : vector<128x32xbf16>, vector<32x128xbf16>, vector<128x128xf32> -> vector<128x128xf32>
    %c0_3 = arith.constant 0 : index
    %c0_4 = arith.constant 0 : index
    %3 = vector.load %arg3[%c0_3, %c0_4] : memref<1x128xf32, #tpu.memory_space<vmem>>, vector<1x128xf32>
    %4 = vector.broadcast %3 : vector<1x128xf32> to vector<128x128xf32>
    %5 = arith.addf %2, %4 : vector<128x128xf32>
    %cst_5 = arith.constant 0.000000e+00 : f32
    %6 = vector.broadcast %cst_5 : f32 to vector<128x128xf32>
    %7 = arith.maximumf %5, %6 : vector<128x128xf32>
    %8 = arith.truncf %7 : vector<128x128xf32> to vector<128x128xbf16>
    %c0_6 = arith.constant 0 : index
    %c0_7 = arith.constant 0 : index
    %9 = vector.load %arg4[%c0_6, %c0_7] : memref<128x128xbf16, #tpu.memory_space<vmem>>, vector<128x128xbf16>
    %cst_8 = arith.constant dense<0.000000e+00> : vector<128x128xf32>
    %10 = tpu.matmul %8, %9, %cst_8 {dimension_numbers = #tpu.dot_dimension_numbers<[1], [0], [0], [1], [0, 0, 1, 1], [], []>} : vector<128x128xbf16>, vector<128x128xbf16>, vector<128x128xf32> -> vector<128x128xf32>
    %c0_9 = arith.constant 0 : index
    %c0_10 = arith.constant 0 : index
    %11 = vector.load %arg5[%c0_9, %c0_10] : memref<1x128xf32, #tpu.memory_space<vmem>>, vector<1x128xf32>
    %12 = vector.broadcast %11 : vector<1x128xf32> to vector<128x128xf32>
    %13 = arith.addf %10, %12 : vector<128x128xf32>
    %cst_11 = arith.constant 0.000000e+00 : f32
    %14 = vector.broadcast %cst_11 : f32 to vector<128x128xf32>
    %15 = arith.maximumf %13, %14 : vector<128x128xf32>
    %16 = arith.truncf %15 : vector<128x128xf32> to vector<128x128xbf16>
    %c0_12 = arith.constant 0 : index
    %c0_13 = arith.constant 0 : index
    %17 = vector.load %arg6[%c0_12, %c0_13] : memref<128x128xbf16, #tpu.memory_space<vmem>>, vector<128x128xbf16>
    %cst_14 = arith.constant dense<0.000000e+00> : vector<128x128xf32>
    %18 = tpu.matmul %16, %17, %cst_14 {dimension_numbers = #tpu.dot_dimension_numbers<[1], [0], [0], [1], [0, 0, 1, 1], [], []>} : vector<128x128xbf16>, vector<128x128xbf16>, vector<128x128xf32> -> vector<128x128xf32>
    %c0_15 = arith.constant 0 : index
    %c0_16 = arith.constant 0 : index
    %19 = vector.load %arg7[%c0_15, %c0_16] : memref<1x128xf32, #tpu.memory_space<vmem>>, vector<1x128xf32>
    %20 = vector.broadcast %19 : vector<1x128xf32> to vector<128x128xf32>
    %21 = arith.addf %18, %20 : vector<128x128xf32>
    %c0_17 = arith.constant 0 : index
    %c0_18 = arith.constant 0 : index
    %22 = vector.load %arg8[%c0_17, %c0_18] : memref<128x128xf32, #tpu.memory_space<vmem>>, vector<128x128xf32>
    tpu.vector_store %arg8[%c0_17, %c0_18], %21 {strides = array<i32>} : memref<128x128xf32, #tpu.memory_space<vmem>>, vector<128x128xf32>,
    return
  }
  func.func @transform_0(%arg0: i32) -> (i32, i32) {
    %c0_i32 = arith.constant 0 : i32
    %c0_i32_0 = arith.constant 0 : i32
    return %arg0, %c0_i32 : i32, i32
  }
  func.func @transform_1(%arg0: i32) -> (i32, i32) {
    %c0_i32 = arith.constant 0 : i32
    %c0_i32_0 = arith.constant 0 : i32
    %c0_i32_1 = arith.constant 0 : i32
    return %c0_i32, %c0_i32_0 : i32, i32
  }
  func.func @transform_2(%arg0: i32) -> (i32, i32) {
    %c0_i32 = arith.constant 0 : i32
    %c0_i32_0 = arith.constant 0 : i32
    %c0_i32_1 = arith.constant 0 : i32
    return %c0_i32, %c0_i32_0 : i32, i32
  }
  func.func @transform_3(%arg0: i32) -> (i32, i32) {
    %c0_i32 = arith.constant 0 : i32
    %c0_i32_0 = arith.constant 0 : i32
    %c0_i32_1 = arith.constant 0 : i32
    return %c0_i32, %c0_i32_0 : i32, i32
  }
  func.func @transform_4(%arg0: i32) -> (i32, i32) {
    %c0_i32 = arith.constant 0 : i32
    %c0_i32_0 = arith.constant 0 : i32
    %c0_i32_1 = arith.constant 0 : i32
    return %c0_i32, %c0_i32_0 : i32, i32
  }
  func.func @transform_5(%arg0: i32) -> (i32, i32) {
    %c0_i32 = arith.constant 0 : i32
    %c0_i32_0 = arith.constant 0 : i32
    %c0_i32_1 = arith.constant 0 : i32
    return %c0_i32, %c0_i32_0 : i32, i32
  }
  func.func @transform_6(%arg0: i32) -> (i32, i32) {
    %c0_i32 = arith.constant 0 : i32
    %c0_i32_0 = arith.constant 0 : i32
    %c0_i32_1 = arith.constant 0 : i32
    return %c0_i32, %c0_i32_0 : i32, i32
  }
  func.func @transform_7(%arg0: i32) -> (i32, i32) {
    %c0_i32 = arith.constant 0 : i32
    %c0_i32_0 = arith.constant 0 : i32
    return %arg0, %c0_i32 : i32, i32
  }
}

</mosaic_0001>

<llo_original>
// kernel: simple_net_forward.1
$region0: #{simple_net_forward.1}
  #allocation0 [shape = 'u32[]', space=smem, size = 0x4, offset = 0x4, fixed_abs, tag = 'smem constant byte address 0x4 - core index']
  #allocation1 [shape = 'u32[144,128]{1,0:T(1,128)}', space=vmem, size = 0x12000, scoped, tag = 'internal scratch']
  %s0 = inlined_call_operand.vmem [shape: bf16[128,32], index: 0, kind: input, shape index: {}]
  %s1 = inlined_call_operand.vmem [shape: bf16[32,128], index: 1, kind: input, shape index: {}]
  %s2 = inlined_call_operand.vmem [shape: f32[1,128], index: 2, kind: input, shape index: {}]
  %s3 = inlined_call_operand.vmem [shape: bf16[128,128], index: 3, kind: input, shape index: {}]
  %s4 = inlined_call_operand.vmem [shape: f32[1,128], index: 4, kind: input, shape index: {}]
  %s5 = inlined_call_operand.vmem [shape: bf16[128,128], index: 5, kind: input, shape index: {}]
  %s6 = inlined_call_operand.vmem [shape: f32[1,128], index: 6, kind: input, shape index: {}]
  %s7 = inlined_call_operand.vmem [shape: f32[128,128], index: 7, kind: output, shape index: {}]
  %s8 = sld [smem:[#allocation0]]
  $region38: #{simple_net_forward.1} parent=0
    _
  %s10 = ssub.s32 1, %s8
  %s11 = scalar_select 0, %s10, %s8
  // Predicated region
  $region2: #{simple_net_forward.1} parent=0 // pred_check
    _
  $region3: #{simple_net_forward.1} parent=0 // pred_check_branch
    %13 = sbr.rel (0) target = $region5
  $region4: #{simple_net_forward.1} parent=0 // pred_region
    _
  $region5: #{simple_net_forward.1} parent=0 // pred_fallthru
    _
  // Predicated region
  $region6: #{simple_net_forward.1} parent=0 // pred_check
    _
  $region7: #{simple_net_forward.1} parent=0 // pred_check_branch
    %15 = sbr.rel (0) target = $region9
  $region8: #{simple_net_forward.1} parent=0 // pred_region
    _
  $region9: #{simple_net_forward.1} parent=0 // pred_fallthru
    _
  // Predicated region
  $region10: #{simple_net_forward.1} parent=0 // pred_check
    _
  $region11: #{simple_net_forward.1} parent=0 // pred_check_branch
    %17 = sbr.rel (0) target = $region13
  $region12: #{simple_net_forward.1} parent=0 // pred_region
    _
  $region13: #{simple_net_forward.1} parent=0 // pred_fallthru
    _
  // Predicated region
  $region14: #{simple_net_forward.1} parent=0 // pred_check
    _
  $region15: #{simple_net_forward.1} parent=0 // pred_check_branch
    %19 = sbr.rel (0) target = $region17
  $region16: #{simple_net_forward.1} parent=0 // pred_region
    _
  $region17: #{simple_net_forward.1} parent=0 // pred_fallthru
    _
  // Predicated region
  $region18: #{simple_net_forward.1} parent=0 // pred_check
    _
  $region19: #{simple_net_forward.1} parent=0 // pred_check_branch
    %21 = sbr.rel (0) target = $region21
  $region20: #{simple_net_forward.1} parent=0 // pred_region
    _
  $region21: #{simple_net_forward.1} parent=0 // pred_fallthru
    _
  // Predicated region
  $region22: #{simple_net_forward.1} parent=0 // pred_check
    _
  $region23: #{simple_net_forward.1} parent=0 // pred_check_branch
    %23 = sbr.rel (0) target = $region25
  $region24: #{simple_net_forward.1} parent=0 // pred_region
    _
  $region25: #{simple_net_forward.1} parent=0 // pred_fallthru
    _
  // Predicated region
  $region26: #{simple_net_forward.1} parent=0 // pred_check
    _
  $region27: #{simple_net_forward.1} parent=0 // pred_check_branch
    %25 = sbr.rel (0) target = $region29
  $region28: #{simple_net_forward.1} parent=0 // pred_region
    _
  $region29: #{simple_net_forward.1} parent=0 // pred_fallthru
    _
  %v27 = vld [vmem:[%s0] sm:$0xf]
  %v28 = vld [vmem:[%s0 + $0x4] sm:$0xf]
  %v29 = vld [vmem:[%s0 + $0x8] sm:$0xf]
  %v30 = vld [vmem:[%s0 + $0xc] sm:$0xf]
  %v31 = vld [vmem:[%s0 + $0x10] sm:$0xf]
  %v32 = vld [vmem:[%s0 + $0x14] sm:$0xf]
  %v33 = vld [vmem:[%s0 + $0x18] sm:$0xf]
  %v34 = vld [vmem:[%s0 + $0x1c] sm:$0xf]
  %v35 = vld [vmem:[%s0 + $0x20] sm:$0xf]
  %v36 = vld [vmem:[%s0 + $0x24] sm:$0xf]
  %v37 = vld [vmem:[%s0 + $0x28] sm:$0xf]
  %v38 = vld [vmem:[%s0 + $0x2c] sm:$0xf]
  %v39 = vld [vmem:[%s0 + $0x30] sm:$0xf]
  %v40 = vld [vmem:[%s0 + $0x34] sm:$0xf]
  %v41 = vld [vmem:[%s0 + $0x38] sm:$0xf]
  %v42 = vld [vmem:[%s0 + $0x3c] sm:$0xf]
  %v43 = vld [vmem:[%s1] sm:$0xf]
  %v44 = vld [vmem:[%s1 + $0x4] sm:$0xf]
  %v45 = vld [vmem:[%s1 + $0x8] sm:$0xf]
  %v46 = vld [vmem:[%s1 + $0xc] sm:$0xf]
  %v47 = vld [vmem:[%s2] sm:$0x1]
  %v49 = vlaneseq
  %v50 = vshrl.u32 %v49, 7
  %v51 = vsub.s32 0, %v50
  %v52 = vrot.slane %v47, %v51
  %v70 = vunpack.c.l.b16 %v27
  %v71 = vunpack.c.l.b16 %v28
  %v72 = vunpack.c.l.b16 %v29
  %v73 = vunpack.c.l.b16 %v30
  %v74 = vunpack.c.l.b16 %v31
  %v75 = vunpack.c.l.b16 %v32
  %v76 = vunpack.c.l.b16 %v33
  %v77 = vunpack.c.l.b16 %v34
  %v78 = vunpack.c.l.b16 %v35
  %v79 = vunpack.c.l.b16 %v36
  %v80 = vunpack.c.l.b16 %v37
  %v81 = vunpack.c.l.b16 %v38
  %v82 = vunpack.c.l.b16 %v39
  %v83 = vunpack.c.l.b16 %v40
  %v84 = vunpack.c.l.b16 %v41
  %v85 = vunpack.c.l.b16 %v42
  %v86 = vpack.c.b16 %v71, %v70
  %v87 = vpack.c.b16 %v73, %v72
  %v88 = vpack.c.b16 %v75, %v74
  %v89 = vpack.c.b16 %v77, %v76
  %v90 = vpack.c.b16 %v79, %v78
  %v91 = vpack.c.b16 %v81, %v80
  %v92 = vpack.c.b16 %v83, %v82
  %v93 = vpack.c.b16 %v85, %v84
  %v98 = vunpack.c.l.b16 %v43
  %v99 = vunpack.c.l.b16 %v44
  %v100 = vunpack.c.l.b16 %v45
  %v101 = vunpack.c.l.b16 %v46
  %v102 = vpack.c.b16 %v99, %v98
  %v103 = vpack.c.b16 %v101, %v100
  %vm106 = vcmask 261120
  %v108 = vsel %vm106, %v86, 0
  %v111 = vsel %vm106, %v87, 0
  %v114 = vsel %vm106, %v88, 0
  %v117 = vsel %vm106, %v89, 0
  %v120 = vsel %vm106, %v90, 0
  %v123 = vsel %vm106, %v91, 0
  %v126 = vsel %vm106, %v92, 0
  %v129 = vsel %vm106, %v93, 0
  %131 = vmatprep.subr.bf16.mxu0 0
  %132 = vmatpush1.bf16.msra.mxu0 %v102
  %133 = vmatprep.subr.bf16.mxu0 0
  %134 = vmatpush1.bf16.msra.mxu0 %v103
  %135 = vmatprep.subr.bf16.mxu0 0
  %136 = vmatpush1.bf16.msra.mxu0 0
  %137 = vmatprep.subr.bf16.mxu0 0
  %138 = vmatpush1.bf16.msra.mxu0 0
  %139 = vmatprep.subr.bf16.mxu0 0
  %140 = vmatpush1.bf16.msra.mxu0 0
  %141 = vmatprep.subr.bf16.mxu0 0
  %142 = vmatpush1.bf16.msra.mxu0 0
  %143 = vmatprep.subr.bf16.mxu0 0
  %144 = vmatpush1.bf16.msra.mxu0 0
  %145 = vmatprep.subr.bf16.mxu0 0
  %146 = vmatpush1.bf16.msra.mxu0 0
  %147 = vmatprep.subr.bf16.mxu0 0
  %148 = vmatpush1.bf16.msra.mxu0 0
  %149 = vmatprep.subr.bf16.mxu0 0
  %150 = vmatpush1.bf16.msra.mxu0 0
  %151 = vmatprep.subr.bf16.mxu0 0
  %152 = vmatpush1.bf16.msra.mxu0 0
  %153 = vmatprep.subr.bf16.mxu0 0
  %154 = vmatpush1.bf16.msra.mxu0 0
  %155 = vmatprep.subr.bf16.mxu0 0
  %156 = vmatpush1.bf16.msra.mxu0 0
  %157 = vmatprep.subr.bf16.mxu0 0
  %158 = vmatpush1.bf16.msra.mxu0 0
  %159 = vmatprep.subr.bf16.mxu0 0
  %160 = vmatpush1.bf16.msra.mxu0 0
  %161 = vmatprep.subr.bf16.mxu0 0
  %162 = vmatpush1.bf16.msra.mxu0 0
  %163 = vmatprep.mubr.bf16.mxu0 0
  %164 = vmatmul.mubr.bf16.gmra.mrb[0].mxu0 %v108
  %v165 = vpop.f32.mrb[0].mxu0
  %v166 = vadd.f32 %v52, %v165
  %v167 = vpop.f32.mrb[0].mxu0
  %v168 = vpop.f32.mrb[0].mxu0
  %v169 = vadd.f32 %v52, %v168
  %v170 = vpop.f32.mrb[0].mxu0
  %171 = vmatprep.mubr.bf16.mxu0 0
  %172 = vmatmul.mubr.bf16.gmra.mrb[0].mxu0 %v111
  %v173 = vpop.f32.mrb[0].mxu0
  %v174 = vadd.f32 %v52, %v173
  %v175 = vpop.f32.mrb[0].mxu0
  %v176 = vpop.f32.mrb[0].mxu0
  %v177 = vadd.f32 %v52, %v176
  %v178 = vpop.f32.mrb[0].mxu0
  %179 = vmatprep.mubr.bf16.mxu0 0
  %180 = vmatmul.mubr.bf16.gmra.mrb[0].mxu0 %v114
  %v181 = vpop.f32.mrb[0].mxu0
  %v182 = vadd.f32 %v52, %v181
  %v183 = vpop.f32.mrb[0].mxu0
  %v184 = vpop.f32.mrb[0].mxu0
  %v185 = vadd.f32 %v52, %v184
  %v186 = vpop.f32.mrb[0].mxu0
  %187 = vmatprep.mubr.bf16.mxu0 0
  %188 = vmatmul.mubr.bf16.gmra.mrb[0].mxu0 %v117
  %v189 = vpop.f32.mrb[0].mxu0
  %v190 = vadd.f32 %v52, %v189
  %v191 = vpop.f32.mrb[0].mxu0
  %v192 = vpop.f32.mrb[0].mxu0
  %v193 = vadd.f32 %v52, %v192
  %v194 = vpop.f32.mrb[0].mxu0
  %195 = vmatprep.mubr.bf16.mxu0 0
  %196 = vmatmul.mubr.bf16.gmra.mrb[0].mxu0 %v120
  %v197 = vpop.f32.mrb[0].mxu0
  %v198 = vadd.f32 %v52, %v197
  %v199 = vpop.f32.mrb[0].mxu0
  %v200 = vpop.f32.mrb[0].mxu0
  %v201 = vadd.f32 %v52, %v200
  %v202 = vpop.f32.mrb[0].mxu0
  %203 = vmatprep.mubr.bf16.mxu0 0
  %204 = vmatmul.mubr.bf16.gmra.mrb[0].mxu0 %v123
  %v205 = vpop.f32.mrb[0].mxu0
  %v206 = vadd.f32 %v52, %v205
  %v207 = vpop.f32.mrb[0].mxu0
  %v208 = vpop.f32.mrb[0].mxu0
  %v209 = vadd.f32 %v52, %v208
  %v210 = vpop.f32.mrb[0].mxu0
  %211 = vmatprep.mubr.bf16.mxu0 0
  %212 = vmatmul.mubr.bf16.gmra.mrb[0].mxu0 %v126
  %v213 = vpop.f32.mrb[0].mxu0
  %v214 = vadd.f32 %v52, %v213
  %v215 = vpop.f32.mrb[0].mxu0
  %v216 = vpop.f32.mrb[0].mxu0
  %v217 = vadd.f32 %v52, %v216
  %v218 = vpop.f32.mrb[0].mxu0
  %219 = vmatprep.mubr.bf16.mxu0 0
  %220 = vmatmul.mubr.bf16.gmra.mrb[0].mxu0 %v129
  %v221 = vpop.f32.mrb[0].mxu0
  %v222 = vadd.f32 %v52, %v221
  %v223 = vpop.f32.mrb[0].mxu0
  %v224 = vpop.f32.mrb[0].mxu0
  %v225 = vadd.f32 %v52, %v224
  %v226 = vpop.f32.mrb[0].mxu0
  %227 = vdwg.mxu0
  %v228 = vmax.f32 %v166, 0.0
  %v229 = vmax.f32 %v169, 0.0
  %v230 = vmax.f32 %v174, 0.0
  %v231 = vmax.f32 %v177, 0.0
  %v232 = vmax.f32 %v182, 0.0
  %v233 = vmax.f32 %v185, 0.0
  %v234 = vmax.f32 %v190, 0.0
  %v235 = vmax.f32 %v193, 0.0
  %v236 = vmax.f32 %v198, 0.0
  %v237 = vmax.f32 %v201, 0.0
  %v238 = vmax.f32 %v206, 0.0
  %v239 = vmax.f32 %v209, 0.0
  %v240 = vmax.f32 %v214, 0.0
  %v241 = vmax.f32 %v217, 0.0
  %v242 = vmax.f32 %v222, 0.0
  %v243 = vmax.f32 %v225, 0.0
  %v244 = vpack.c.bf16 %v229, %v228
  %v245 = vpack.c.bf16 %v231, %v230
  %v246 = vpack.c.bf16 %v233, %v232
  %v247 = vpack.c.bf16 %v235, %v234
  %v248 = vpack.c.bf16 %v237, %v236
  %v249 = vpack.c.bf16 %v239, %v238
  %v250 = vpack.c.bf16 %v241, %v240
  %v251 = vpack.c.bf16 %v243, %v242
  %v252 = vld [vmem:[%s3] sm:$0xf]
  %v253 = vld [vmem:[%s3 + $0x4] sm:$0xf]
  %v254 = vld [vmem:[%s3 + $0x8] sm:$0xf]
  %v255 = vld [vmem:[%s3 + $0xc] sm:$0xf]
  %v256 = vld [vmem:[%s3 + $0x10] sm:$0xf]
  %v257 = vld [vmem:[%s3 + $0x14] sm:$0xf]
  %v258 = vld [vmem:[%s3 + $0x18] sm:$0xf]
  %v259 = vld [vmem:[%s3 + $0x1c] sm:$0xf]
  %v260 = vld [vmem:[%s3 + $0x20] sm:$0xf]
  %v261 = vld [vmem:[%s3 + $0x24] sm:$0xf]
  %v262 = vld [vmem:[%s3 + $0x28] sm:$0xf]
  %v263 = vld [vmem:[%s3 + $0x2c] sm:$0xf]
  %v264 = vld [vmem:[%s3 + $0x30] sm:$0xf]
  %v265 = vld [vmem:[%s3 + $0x34] sm:$0xf]
  %v266 = vld [vmem:[%s3 + $0x38] sm:$0xf]
  %v267 = vld [vmem:[%s3 + $0x3c] sm:$0xf]
  %v268 = vld [vmem:[%s4] sm:$0x1]
  %v270 = vlaneseq
  %v271 = vshrl.u32 %v270, 7
  %v272 = vsub.s32 0, %v271
  %v273 = vrot.slane %v268, %v272
  %v291 = vunpack.c.l.b16 %v252
  %v292 = vunpack.c.l.b16 %v253
  %v293 = vunpack.c.l.b16 %v254
  %v294 = vunpack.c.l.b16 %v255
  %v295 = vunpack.c.l.b16 %v256
  %v296 = vunpack.c.l.b16 %v257
  %v297 = vunpack.c.l.b16 %v258
  %v298 = vunpack.c.l.b16 %v259
  %v299 = vunpack.c.l.b16 %v260
  %v300 = vunpack.c.l.b16 %v261
  %v301 = vunpack.c.l.b16 %v262
  %v302 = vunpack.c.l.b16 %v263
  %v303 = vunpack.c.l.b16 %v264
  %v304 = vunpack.c.l.b16 %v265
  %v305 = vunpack.c.l.b16 %v266
  %v306 = vunpack.c.l.b16 %v267
  %v307 = vpack.c.b16 %v292, %v291
  %v308 = vpack.c.b16 %v294, %v293
  %v309 = vpack.c.b16 %v296, %v295
  %v310 = vpack.c.b16 %v298, %v297
  %v311 = vpack.c.b16 %v300, %v299
  %v312 = vpack.c.b16 %v302, %v301
  %v313 = vpack.c.b16 %v304, %v303
  %v314 = vpack.c.b16 %v306, %v305
  %323 = vmatprep.subr.bf16.mxu0 0
  %324 = vmatpush1.bf16.msra.mxu0 %v307
  %325 = vmatprep.subr.bf16.mxu0 0
  %326 = vmatpush1.bf16.msra.mxu0 %v308
  %327 = vmatprep.subr.bf16.mxu0 0
  %328 = vmatpush1.bf16.msra.mxu0 %v309
  %329 = vmatprep.subr.bf16.mxu0 0
  %330 = vmatpush1.bf16.msra.mxu0 %v310
  %331 = vmatprep.subr.bf16.mxu0 0
  %332 = vmatpush1.bf16.msra.mxu0 %v311
  %333 = vmatprep.subr.bf16.mxu0 0
  %334 = vmatpush1.bf16.msra.mxu0 %v312
  %335 = vmatprep.subr.bf16.mxu0 0
  %336 = vmatpush1.bf16.msra.mxu0 %v313
  %337 = vmatprep.subr.bf16.mxu0 0
  %338 = vmatpush1.bf16.msra.mxu0 %v314
  %339 = vmatprep.subr.bf16.mxu0 0
  %340 = vmatpush1.bf16.msra.mxu0 0
  %341 = vmatprep.subr.bf16.mxu0 0
  %342 = vmatpush1.bf16.msra.mxu0 0
  %343 = vmatprep.subr.bf16.mxu0 0
  %344 = vmatpush1.bf16.msra.mxu0 0
  %345 = vmatprep.subr.bf16.mxu0 0
  %346 = vmatpush1.bf16.msra.mxu0 0
  %347 = vmatprep.subr.bf16.mxu0 0
  %348 = vmatpush1.bf16.msra.mxu0 0
  %349 = vmatprep.subr.bf16.mxu0 0
  %350 = vmatpush1.bf16.msra.mxu0 0
  %351 = vmatprep.subr.bf16.mxu0 0
  %352 = vmatpush1.bf16.msra.mxu0 0
  %353 = vmatprep.subr.bf16.mxu0 0
  %354 = vmatpush1.bf16.msra.mxu0 0
  %355 = vmatprep.mubr.bf16.mxu0 0
  %356 = vmatmul.mubr.bf16.gmra.mrb[0].mxu0 %v244
  %v357 = vpop.f32.mrb[0].mxu0
  %v358 = vadd.f32 %v273, %v357
  %v359 = vpop.f32.mrb[0].mxu0
  %v360 = vpop.f32.mrb[0].mxu0
  %v361 = vadd.f32 %v273, %v360
  %v362 = vpop.f32.mrb[0].mxu0
  %363 = vmatprep.mubr.bf16.mxu0 0
  %364 = vmatmul.mubr.bf16.gmra.mrb[0].mxu0 %v245
  %v365 = vpop.f32.mrb[0].mxu0
  %v366 = vadd.f32 %v273, %v365
  %v367 = vpop.f32.mrb[0].mxu0
  %v368 = vpop.f32.mrb[0].mxu0
  %v369 = vadd.f32 %v273, %v368
  %v370 = vpop.f32.mrb[0].mxu0
  %371 = vmatprep.mubr.bf16.mxu0 0
  %372 = vmatmul.mubr.bf16.gmra.mrb[0].mxu0 %v246
  %v373 = vpop.f32.mrb[0].mxu0
  %v374 = vadd.f32 %v273, %v373
  %v375 = vpop.f32.mrb[0].mxu0
  %v376 = vpop.f32.mrb[0].mxu0
  %v377 = vadd.f32 %v273, %v376
  %v378 = vpop.f32.mrb[0].mxu0
  %379 = vmatprep.mubr.bf16.mxu0 0
  %380 = vmatmul.mubr.bf16.gmra.mrb[0].mxu0 %v247
  %v381 = vpop.f32.mrb[0].mxu0
  %v382 = vadd.f32 %v273, %v381
  %v383 = vpop.f32.mrb[0].mxu0
  %v384 = vpop.f32.mrb[0].mxu0
  %v385 = vadd.f32 %v273, %v384
  %v386 = vpop.f32.mrb[0].mxu0
  %387 = vmatprep.mubr.bf16.mxu0 0
  %388 = vmatmul.mubr.bf16.gmra.mrb[0].mxu0 %v248
  %v389 = vpop.f32.mrb[0].mxu0
  %v390 = vadd.f32 %v273, %v389
  %v391 = vpop.f32.mrb[0].mxu0
  %v392 = vpop.f32.mrb[0].mxu0
  %v393 = vadd.f32 %v273, %v392
  %v394 = vpop.f32.mrb[0].mxu0
  %395 = vmatprep.mubr.bf16.mxu0 0
  %396 = vmatmul.mubr.bf16.gmra.mrb[0].mxu0 %v249
  %v397 = vpop.f32.mrb[0].mxu0
  %v398 = vadd.f32 %v273, %v397
  %v399 = vpop.f32.mrb[0].mxu0
  %v400 = vpop.f32.mrb[0].mxu0
  %v401 = vadd.f32 %v273, %v400
  %v402 = vpop.f32.mrb[0].mxu0
  %403 = vmatprep.mubr.bf16.mxu0 0
  %404 = vmatmul.mubr.bf16.gmra.mrb[0].mxu0 %v250
  %v405 = vpop.f32.mrb[0].mxu0
  %v406 = vadd.f32 %v273, %v405
  %v407 = vpop.f32.mrb[0].mxu0
  %v408 = vpop.f32.mrb[0].mxu0
  %v409 = vadd.f32 %v273, %v408
  %v410 = vpop.f32.mrb[0].mxu0
  %411 = vmatprep.mubr.bf16.mxu0 0
  %412 = vmatmul.mubr.bf16.gmra.mrb[0].mxu0 %v251
  %v413 = vpop.f32.mrb[0].mxu0
  %v414 = vadd.f32 %v273, %v413
  %v415 = vpop.f32.mrb[0].mxu0
  %v416 = vpop.f32.mrb[0].mxu0
  %v417 = vadd.f32 %v273, %v416
  %v418 = vpop.f32.mrb[0].mxu0
  %419 = vdwg.mxu0
  %v420 = vmax.f32 %v358, 0.0
  %v421 = vmax.f32 %v361, 0.0
  %v422 = vmax.f32 %v366, 0.0
  %v423 = vmax.f32 %v369, 0.0
  %v424 = vmax.f32 %v374, 0.0
  %v425 = vmax.f32 %v377, 0.0
  %v426 = vmax.f32 %v382, 0.0
  %v427 = vmax.f32 %v385, 0.0
  %v428 = vmax.f32 %v390, 0.0
  %v429 = vmax.f32 %v393, 0.0
  %v430 = vmax.f32 %v398, 0.0
  %v431 = vmax.f32 %v401, 0.0
  %v432 = vmax.f32 %v406, 0.0
  %v433 = vmax.f32 %v409, 0.0
  %v434 = vmax.f32 %v414, 0.0
  %v435 = vmax.f32 %v417, 0.0
  %v436 = vpack.c.bf16 %v421, %v420
  %v437 = vpack.c.bf16 %v423, %v422
  %v438 = vpack.c.bf16 %v425, %v424
  %v439 = vpack.c.bf16 %v427, %v426
  %v440 = vpack.c.bf16 %v429, %v428
  %v441 = vpack.c.bf16 %v431, %v430
  %v442 = vpack.c.bf16 %v433, %v432
  %v443 = vpack.c.bf16 %v435, %v434
  %v444 = vld [vmem:[%s5] sm:$0xf]
  %v445 = vld [vmem:[%s5 + $0x4] sm:$0xf]
  %v446 = vld [vmem:[%s5 + $0x8] sm:$0xf]
  %v447 = vld [vmem:[%s5 + $0xc] sm:$0xf]
  %v448 = vld [vmem:[%s5 + $0x10] sm:$0xf]
  %v449 = vld [vmem:[%s5 + $0x14] sm:$0xf]
  %v450 = vld [vmem:[%s5 + $0x18] sm:$0xf]
  %v451 = vld [vmem:[%s5 + $0x1c] sm:$0xf]
  %v452 = vld [vmem:[%s5 + $0x20] sm:$0xf]
  %v453 = vld [vmem:[%s5 + $0x24] sm:$0xf]
  %v454 = vld [vmem:[%s5 + $0x28] sm:$0xf]
  %v455 = vld [vmem:[%s5 + $0x2c] sm:$0xf]
  %v456 = vld [vmem:[%s5 + $0x30] sm:$0xf]
  %v457 = vld [vmem:[%s5 + $0x34] sm:$0xf]
  %v458 = vld [vmem:[%s5 + $0x38] sm:$0xf]
  %v459 = vld [vmem:[%s5 + $0x3c] sm:$0xf]
  %v460 = vld [vmem:[%s6] sm:$0x1]
  %v462 = vlaneseq
  %v463 = vshrl.u32 %v462, 7
  %v464 = vsub.s32 0, %v463
  %v465 = vrot.slane %v460, %v464
  %v483 = vunpack.c.l.b16 %v444
  %v484 = vunpack.c.l.b16 %v445
  %v485 = vunpack.c.l.b16 %v446
  %v486 = vunpack.c.l.b16 %v447
  %v487 = vunpack.c.l.b16 %v448
  %v488 = vunpack.c.l.b16 %v449
  %v489 = vunpack.c.l.b16 %v450
  %v490 = vunpack.c.l.b16 %v451
  %v491 = vunpack.c.l.b16 %v452
  %v492 = vunpack.c.l.b16 %v453
  %v493 = vunpack.c.l.b16 %v454
  %v494 = vunpack.c.l.b16 %v455
  %v495 = vunpack.c.l.b16 %v456
  %v496 = vunpack.c.l.b16 %v457
  %v497 = vunpack.c.l.b16 %v458
  %v498 = vunpack.c.l.b16 %v459
  %v499 = vpack.c.b16 %v484, %v483
  %v500 = vpack.c.b16 %v486, %v485
  %v501 = vpack.c.b16 %v488, %v487
  %v502 = vpack.c.b16 %v490, %v489
  %v503 = vpack.c.b16 %v492, %v491
  %v504 = vpack.c.b16 %v494, %v493
  %v505 = vpack.c.b16 %v496, %v495
  %v506 = vpack.c.b16 %v498, %v497
  %515 = vmatprep.subr.bf16.mxu0 0
  %516 = vmatpush1.bf16.msra.mxu0 %v499
  %517 = vmatprep.subr.bf16.mxu0 0
  %518 = vmatpush1.bf16.msra.mxu0 %v500
  %519 = vmatprep.subr.bf16.mxu0 0
  %520 = vmatpush1.bf16.msra.mxu0 %v501
  %521 = vmatprep.subr.bf16.mxu0 0
  %522 = vmatpush1.bf16.msra.mxu0 %v502
  %523 = vmatprep.subr.bf16.mxu0 0
  %524 = vmatpush1.bf16.msra.mxu0 %v503
  %525 = vmatprep.subr.bf16.mxu0 0
  %526 = vmatpush1.bf16.msra.mxu0 %v504
  %527 = vmatprep.subr.bf16.mxu0 0
  %528 = vmatpush1.bf16.msra.mxu0 %v505
  %529 = vmatprep.subr.bf16.mxu0 0
  %530 = vmatpush1.bf16.msra.mxu0 %v506
  %531 = vmatprep.subr.bf16.mxu0 0
  %532 = vmatpush1.bf16.msra.mxu0 0
  %533 = vmatprep.subr.bf16.mxu0 0
  %534 = vmatpush1.bf16.msra.mxu0 0
  %535 = vmatprep.subr.bf16.mxu0 0
  %536 = vmatpush1.bf16.msra.mxu0 0
  %537 = vmatprep.subr.bf16.mxu0 0
  %538 = vmatpush1.bf16.msra.mxu0 0
  %539 = vmatprep.subr.bf16.mxu0 0
  %540 = vmatpush1.bf16.msra.mxu0 0
  %541 = vmatprep.subr.bf16.mxu0 0
  %542 = vmatpush1.bf16.msra.mxu0 0
  %543 = vmatprep.subr.bf16.mxu0 0
  %544 = vmatpush1.bf16.msra.mxu0 0
  %545 = vmatprep.subr.bf16.mxu0 0
  %546 = vmatpush1.bf16.msra.mxu0 0
  %547 = vmatprep.mubr.bf16.mxu0 0
  %548 = vmatmul.mubr.bf16.gmra.mrb[0].mxu0 %v436
  %v549 = vpop.f32.mrb[0].mxu0
  %v550 = vadd.f32 %v465, %v549
  %v551 = vpop.f32.mrb[0].mxu0
  %v552 = vpop.f32.mrb[0].mxu0
  %v553 = vadd.f32 %v465, %v552
  %v554 = vpop.f32.mrb[0].mxu0
  %555 = vmatprep.mubr.bf16.mxu0 0
  %556 = vmatmul.mubr.bf16.gmra.mrb[0].mxu0 %v437
  %v557 = vpop.f32.mrb[0].mxu0
  %v558 = vadd.f32 %v465, %v557
  %v559 = vpop.f32.mrb[0].mxu0
  %v560 = vpop.f32.mrb[0].mxu0
  %v561 = vadd.f32 %v465, %v560
  %v562 = vpop.f32.mrb[0].mxu0
  %563 = vmatprep.mubr.bf16.mxu0 0
  %564 = vmatmul.mubr.bf16.gmra.mrb[0].mxu0 %v438
  %v565 = vpop.f32.mrb[0].mxu0
  %v566 = vadd.f32 %v465, %v565
  %v567 = vpop.f32.mrb[0].mxu0
  %v568 = vpop.f32.mrb[0].mxu0
  %v569 = vadd.f32 %v465, %v568
  %v570 = vpop.f32.mrb[0].mxu0
  %571 = vmatprep.mubr.bf16.mxu0 0
  %572 = vmatmul.mubr.bf16.gmra.mrb[0].mxu0 %v439
  %v573 = vpop.f32.mrb[0].mxu0
  %v574 = vadd.f32 %v465, %v573
  %v575 = vpop.f32.mrb[0].mxu0
  %v576 = vpop.f32.mrb[0].mxu0
  %v577 = vadd.f32 %v465, %v576
  %v578 = vpop.f32.mrb[0].mxu0
  %579 = vmatprep.mubr.bf16.mxu0 0
  %580 = vmatmul.mubr.bf16.gmra.mrb[0].mxu0 %v440
  %v581 = vpop.f32.mrb[0].mxu0
  %v582 = vadd.f32 %v465, %v581
  %v583 = vpop.f32.mrb[0].mxu0
  %v584 = vpop.f32.mrb[0].mxu0
  %v585 = vadd.f32 %v465, %v584
  %v586 = vpop.f32.mrb[0].mxu0
  %587 = vmatprep.mubr.bf16.mxu0 0
  %588 = vmatmul.mubr.bf16.gmra.mrb[0].mxu0 %v441
  %v589 = vpop.f32.mrb[0].mxu0
  %v590 = vadd.f32 %v465, %v589
  %v591 = vpop.f32.mrb[0].mxu0
  %v592 = vpop.f32.mrb[0].mxu0
  %v593 = vadd.f32 %v465, %v592
  %v594 = vpop.f32.mrb[0].mxu0
  %595 = vmatprep.mubr.bf16.mxu0 0
  %596 = vmatmul.mubr.bf16.gmra.mrb[0].mxu0 %v442
  %v597 = vpop.f32.mrb[0].mxu0
  %v598 = vadd.f32 %v465, %v597
  %v599 = vpop.f32.mrb[0].mxu0
  %v600 = vpop.f32.mrb[0].mxu0
  %v601 = vadd.f32 %v465, %v600
  %v602 = vpop.f32.mrb[0].mxu0
  %603 = vmatprep.mubr.bf16.mxu0 0
  %604 = vmatmul.mubr.bf16.gmra.mrb[0].mxu0 %v443
  %v605 = vpop.f32.mrb[0].mxu0
  %v606 = vadd.f32 %v465, %v605
  %v607 = vpop.f32.mrb[0].mxu0
  %v608 = vpop.f32.mrb[0].mxu0
  %v609 = vadd.f32 %v465, %v608
  %v610 = vpop.f32.mrb[0].mxu0
  %611 = vdwg.mxu0
  %612 = vst [vmem:[%s7] sm:$0xff] %v550
  %613 = vst [vmem:[%s7 + $0x8] sm:$0xff] %v553
  %614 = vst [vmem:[%s7 + $0x10] sm:$0xff] %v558
  %615 = vst [vmem:[%s7 + $0x18] sm:$0xff] %v561
  %616 = vst [vmem:[%s7 + $0x20] sm:$0xff] %v566
  %617 = vst [vmem:[%s7 + $0x28] sm:$0xff] %v569
  %618 = vst [vmem:[%s7 + $0x30] sm:$0xff] %v574
  %619 = vst [vmem:[%s7 + $0x38] sm:$0xff] %v577
  %620 = vst [vmem:[%s7 + $0x40] sm:$0xff] %v582
  %621 = vst [vmem:[%s7 + $0x48] sm:$0xff] %v585
  %622 = vst [vmem:[%s7 + $0x50] sm:$0xff] %v590
  %623 = vst [vmem:[%s7 + $0x58] sm:$0xff] %v593
  %624 = vst [vmem:[%s7 + $0x60] sm:$0xff] %v598
  %625 = vst [vmem:[%s7 + $0x68] sm:$0xff] %v601
  %626 = vst [vmem:[%s7 + $0x70] sm:$0xff] %v606
  %627 = vst [vmem:[%s7 + $0x78] sm:$0xff] %v609
  // Predicated region
  $region30: #{simple_net_forward.1} parent=0 // pred_check
    _
  $region31: #{simple_net_forward.1} parent=0 // pred_check_branch
    %629 = sbr.rel (0) target = $region33
  $region32: #{simple_net_forward.1} parent=0 // pred_region
    _
  $region33: #{simple_net_forward.1} parent=0 // pred_fallthru
    _
  // Predicated region
  $region34: #{simple_net_forward.1} parent=0 // pred_check
    _
  $region35: #{simple_net_forward.1} parent=0 // pred_check_branch
    %631 = sbr.rel (0) target = $region37
  $region36: #{simple_net_forward.1} parent=0 // pred_region
    _
  $region37: #{simple_net_forward.1} parent=0 // pred_fallthru
    _

</llo_original>
